<compile_context>
chip_gen: v5e
topology: v5e:2x2
jax: 0.10.0
libtpu: 0.0.40
codegen_flags: <defaults>
</compile_context>

<pallas_src>
import functools

import jax
import jax.numpy as jnp
import numpy as np
from jax.experimental import pallas as pl
from jax.experimental.pallas import tpu as pltpu


# ------------------------------ VMEM budget -----------------------------------
def _vmem_limit_bytes():
    # ~3/4 of physical VMEM, capped at 100 MiB (≈96 MiB on v5e/v6e's 128 MiB,
    # ≈48 MiB on v7x's 64 MiB), per-generation as suggested by the perf review.
    try:
        cap = pltpu.get_tpu_info().vmem_capacity_bytes
    except Exception:
        return 64 * 1024 * 1024
    return int(min(cap * 3 // 4, 100 * 1024 * 1024))


_VMEM_LIMIT = _vmem_limit_bytes()


def _pick_row_tile(n, want=512):
    """Row tile for the prologue (must be %128 for the (H, tile) output, or == n)."""
    if n <= want:
        return n
    for t in (512, 256, 128):
        if t <= want and n % t == 0:
            return t
    return n


def _pick_dst_tile(n, want):
    """Dst-node tile: largest candidate <= want that divides n and is %8."""
    if n <= want:
        return n
    for t in (want, 512, 256, 128, 64, 32, 16, 8):
        if t <= want and n % t == 0 and t % 8 == 0:
            return t
    return n


# --------------------------- Prologue kernel ----------------------------------
def _gat_project_kernel(h_ref, w_ref, al_ref, ar_ref, z_ref, elt_ref, er_ref):
    # Projection on the MXU (bf16 operands, f32 accumulation); z stored as bf16.
    z = jnp.dot(h_ref[...].astype(jnp.bfloat16), w_ref[...].astype(jnp.bfloat16),
                preferred_element_type=jnp.float32)            # (TILE_R, H*D)
    z_bf = z.astype(jnp.bfloat16)
    z_ref[...] = z_bf
    # el^T produced directly in (H, TILE_R) orientation on the MXU (contract attn-pack
    # dim 0 with z dim 1) -> no XLU transpose anywhere in the layer.
    elt_ref[...] = jax.lax.dot_general(
        al_ref[...].astype(jnp.bfloat16), z_bf,
        dimension_numbers=(((0,), (1,)), ((), ())),
        preferred_element_type=jnp.float32)                    # (H, TILE_R)
    er_ref[...] = jnp.dot(z_bf, ar_ref[...].astype(jnp.bfloat16),
                          preferred_element_type=jnp.float32)  # (TILE_R, H)


# --------------------------- Attention kernel ----------------------------------
def _gat_attend_kernel(z_ref, elt_ref, er_ref, b_ref, adj_ref, *rest, num_heads,
                       head_dim, neg_slope, residual, apply_tanh):
    if residual:
        hres_ref, o_ref = rest
    else:
        (o_ref,) = rest

    z = z_ref[...]                                    # (N, H*D) bf16, all src nodes
    elt = elt_ref[...]                                # (H, N)   f32 src scores (lanes=src)
    er = er_ref[...]                                  # (TILE_D, H) f32 dst scores
    # Additive mask: 0 on edges, -1e30 on non-edges (hoisted out of the head loop).
    # Masked row-max below makes the softmax robust even if a non-edge score dominates.
    neg_mask = jnp.where(adj_ref[...] > 0, 0.0, -1e30)  # (TILE_D, N) f32

    # Static unroll over heads (H is small).  TODO(synk): for large H use lax.fori_loop
    # plus a batched/packed aggregation matmul to bound vreg live ranges and fill the
    # 128/256-wide MXU (head_dim=8 leaves it mostly idle).
    heads_out = []
    for h in range(num_heads):
        e = er[:, h:h + 1] + elt[h:h + 1, :]              # (TILE_D, N) broadcast add
        e = jnp.where(e > 0, e, neg_slope * e)            # leaky_relu
        e = e + neg_mask                                  # mask non-edges
        m = jnp.max(e, axis=1, keepdims=True)             # masked row max (finite: self-loops)
        p = jnp.exp(e - m)                                # exactly 0.0 on non-edges
        s = jnp.sum(p, axis=1, keepdims=True)
        alpha = p * pl.reciprocal(s, approx=True)         # EUP reciprocal + VPU mul
        zh = z[:, h * head_dim:(h + 1) * head_dim]        # (N, D) bf16
        heads_out.append(jnp.dot(alpha.astype(jnp.bfloat16), zh,
                                 preferred_element_type=jnp.float32))  # (TILE_D, D)

    # One lane-contiguous result assembled in registers -> single store.
    out = jnp.concatenate(heads_out, axis=-1) + b_ref[...]   # (TILE_D, H*D)
    if residual:                                              # identity residual
        out = out + hres_ref[...]
    # GATConv activation = ELU (f32 VPU/EUP math).
    out = jnp.where(out > 0, out, jnp.exp(jnp.minimum(out, 0.0)) - 1.0)
    if apply_tanh:                                            # GATEmbedder final torch.tanh
        out = jnp.tanh(out)
    o_ref[...] = out


# ------------------------------ Layer wrapper ----------------------------------
def gat_layer(h, w, al_pack, ar_pack, bias, adj_q, *, num_heads, head_dim,
              neg_slope, residual, apply_tanh, tile_d=256):
    n, f_in = h.shape
    out_dim = num_heads * head_dim

    # ---- prologue: projection + attention scores, hoisted out of the dst grid ----
    tile_r = _pick_row_tile(n)
    z_bf, el_t, er = pl.pallas_call(
        _gat_project_kernel,
        out_shape=(jax.ShapeDtypeStruct((n, out_dim), jnp.bfloat16),
                   jax.ShapeDtypeStruct((num_heads, n), jnp.float32),
                   jax.ShapeDtypeStruct((n, num_heads), jnp.float32)),
        grid_spec=pltpu.PrefetchScalarGridSpec(
            num_scalar_prefetch=0,
            grid=(n // tile_r,),
            in_specs=[
                pl.BlockSpec((tile_r, f_in), lambda i: (i, 0)),        # h rows
                pl.BlockSpec((f_in, out_dim), lambda i: (0, 0)),       # W
                pl.BlockSpec((out_dim, num_heads), lambda i: (0, 0)),  # attn_l pack
                pl.BlockSpec((out_dim, num_heads), lambda i: (0, 0)),  # attn_r pack
            ],
            out_specs=(
                pl.BlockSpec((tile_r, out_dim), lambda i: (i, 0)),     # z (bf16)
                pl.BlockSpec((num_heads, tile_r), lambda i: (0, i)),   # el^T
                pl.BlockSpec((tile_r, num_heads), lambda i: (i, 0)),   # er
            )),
        compiler_params=pltpu.CompilerParams(
            dimension_semantics=("parallel",),
            vmem_limit_bytes=_VMEM_LIMIT),
    )(h, w, al_pack, ar_pack)

    # ---- main: per-dst-tile masked softmax + per-head aggregation ----
    tile_d = _pick_dst_tile(n, tile_d)
    kernel = functools.partial(
        _gat_attend_kernel, num_heads=num_heads, head_dim=head_dim,
        neg_slope=neg_slope, residual=residual, apply_tanh=apply_tanh)

    # NOTE: z / el^T / bias use constant index_maps (fetched once).
    # TODO(synk): set pipeline_mode=pl.Buffered(1) on them if the compiler still
    # double-buffers constant blocks (halves resident VMEM; matters on v7x's 64 MiB).
    in_specs = [
        pl.BlockSpec((n, out_dim), lambda i: (0, 0)),         # z (all src, bf16)
        pl.BlockSpec((num_heads, n), lambda i: (0, 0)),       # el^T
        pl.BlockSpec((tile_d, num_heads), lambda i: (i, 0)),  # er, dst tile
        pl.BlockSpec((1, out_dim), lambda i: (0, 0)),         # bias
        pl.BlockSpec((tile_d, n), lambda i: (i, 0)),          # adj, dst tile (bf16)
    ]
    args = [z_bf, el_t, er, bias, adj_q]
    if residual:
        in_specs.append(pl.BlockSpec((tile_d, f_in), lambda i: (i, 0)))  # h (residual)
        args.append(h)

    cost = pl.CostEstimate(
        flops=int(2 * n * n * out_dim + 10 * n * n * num_heads),
        transcendentals=int(n * n * num_heads),
        bytes_accessed=int(2 * n * n + 2 * n * out_dim + 4 * n * out_dim
                           + 8 * n * num_heads + (4 * n * f_in if residual else 0)))

    return pl.pallas_call(
        kernel,
        out_shape=jax.ShapeDtypeStruct((n, out_dim), jnp.float32),
        grid_spec=pltpu.PrefetchScalarGridSpec(
            num_scalar_prefetch=0,
            grid=(n // tile_d,),
            in_specs=in_specs,
            out_specs=pl.BlockSpec((tile_d, out_dim), lambda i: (i, 0))),
        compiler_params=pltpu.CompilerParams(
            dimension_semantics=("parallel",),     # dst tiles independent (megacore v7x)
            vmem_limit_bytes=_VMEM_LIMIT),
        cost_estimate=cost,
    )(*args)


# ------------------------- Parameter construction ----------------------------
def _pack_attn_block_diag(attn):
    """(H, D) -> (H*D, H) block-diagonal so z @ pack yields per-head scores."""
    h, d = attn.shape
    a = np.zeros((h * d, h), np.float32)
    arr = np.asarray(attn)
    for i in range(h):
        a[i * d:(i + 1) * d, i] = arr[i]
    return jnp.asarray(a)


def init_gat_embedder_params(key, num_layers, in_dim, num_hidden, heads):
    params = []
    f_in = in_dim
    for l in range(num_layers):
        h_l, d_l = heads[l], num_hidden
        key, k_w, k_al, k_ar, k_b = jax.random.split(key, 5)
        attn_l = jax.random.normal(k_al, (h_l, d_l), jnp.float32) * 0.1
        attn_r = jax.random.normal(k_ar, (h_l, d_l), jnp.float32) * 0.1
        params.append(dict(
            w=jax.random.normal(k_w, (f_in, h_l * d_l), jnp.float32) * 0.1,
            attn_l=attn_l,
            attn_r=attn_r,
            al_pack=_pack_attn_block_diag(attn_l),
            ar_pack=_pack_attn_block_diag(attn_r),
            bias=jax.random.normal(k_b, (1, h_l * d_l), jnp.float32) * 0.01,
        ))
        f_in = h_l * d_l
    return params


def gat_embedder_forward(params, adj, inputs, *, num_hidden, heads, neg_slope,
                         residual, tile_d=256):
    # feat_drop / attn_drop: eval mode -> identity (no dropout applied)
    h = inputs.astype(jnp.float32)
    # adj streamed as bf16 (exact for 0/1; half the f32 DMA bytes).
    # TODO(synk): int8 / bit-packed adj for production N (needs tile_d>=32, lane %128).
    adj_q = adj.astype(jnp.bfloat16)
    num_layers = len(params)
    for l in range(num_layers):
        p = params[l]
        f_in = h.shape[1]
        # Identity residual only when dims match (DGL would otherwise use a Linear
        # res_fc; not used by this GATEmbedder config).
        use_res = residual and l > 0 and f_in == heads[l] * num_hidden
        h = gat_layer(
            h, p["w"], p["al_pack"], p["ar_pack"], p["bias"], adj_q,
            num_heads=heads[l], head_dim=num_hidden, neg_slope=neg_slope,
            residual=use_res, apply_tanh=(l == num_layers - 1), tile_d=tile_d)
    return h


# ---------------------------- Pure-JAX reference ------------------------------
def _reference(params, adj, inputs, *, num_hidden, heads, neg_slope, residual):
    h = inputs.astype(jnp.float32)
    num_layers = len(params)
    for l in range(num_layers):
        p = params[l]
        H, D = heads[l], num_hidden
        z = h @ p["w"]                                        # (N, H*D)
        zr = z.reshape(z.shape[0], H, D)
        el = jnp.sum(zr * p["attn_l"][None], axis=-1)         # (N, H)
        er = jnp.sum(zr * p["attn_r"][None], axis=-1)         # (N, H)
        e = er[:, None, :] + el[None, :, :]                   # (N_dst, N_src, H)
        e = jnp.where(e > 0, e, neg_slope * e)
        e = jnp.where(adj[..., None] > 0, e, -1e30)
        m = jnp.max(e, axis=1, keepdims=True)
        pexp = jnp.exp(e - m) * adj[..., None]
        alpha = pexp / jnp.sum(pexp, axis=1, keepdims=True)   # (N_dst, N_src, H)
        out = jnp.einsum("dsh,shf->dhf", alpha, zr).reshape(z.shape[0], H * D)
        out = out + p["bias"]
        if residual and l > 0:
            out = out + h
        out = jnp.where(out > 0, out, jnp.exp(jnp.minimum(out, 0.0)) - 1.0)
        h = out
    return jnp.tanh(h)


# ----------------------------------- main -------------------------------------
if __name__ == "__main__":
    # Small config consistent with GATEmbedder.__init__
    N = 16            # number of graph nodes
    IN_DIM = 8
    NUM_HIDDEN = 8
    HEADS = [2, 2]
    NUM_LAYERS = 2
    NEG_SLOPE = 0.2
    RESIDUAL = True   # layers >= 1; layer 0 always residual=False (as in the module)
    TILE_D = 8        # dst-node tile -> grid of 2 (exercises tiling / megacore path)

    key = jax.random.PRNGKey(0)
    key, k_feat, k_adj = jax.random.split(key, 3)

    inputs = jax.random.normal(k_feat, (N, IN_DIM), jnp.float32)
    # Deterministic random graph + self-loops; adj[dst, src] = 1.0 iff edge src->dst.
    adj = (jax.random.uniform(k_adj, (N, N)) < 0.3).astype(jnp.float32)
    adj = jnp.maximum(adj, jnp.eye(N, dtype=jnp.float32))
    # Softmax relies on self-loops (every dst has >= 1 incoming edge).
    assert bool(jnp.all(jnp.diag(adj) == 1.0))

    params = init_gat_embedder_params(key, NUM_LAYERS, IN_DIM, NUM_HIDDEN, HEADS)

    out = gat_embedder_forward(params, adj, inputs, num_hidden=NUM_HIDDEN,
                               heads=HEADS, neg_slope=NEG_SLOPE,
                               residual=RESIDUAL, tile_d=TILE_D)
    out = jax.block_until_ready(out)

    ref = _reference(params, adj, inputs, num_hidden=NUM_HIDDEN, heads=HEADS,
                     neg_slope=NEG_SLOPE, residual=RESIDUAL)
    # bf16 MXU operands + approx reciprocal in the kernel vs pure-f32 reference.
    np.testing.assert_allclose(np.asarray(out), np.asarray(ref),
                               rtol=2e-2, atol=2e-2)
    assert out.shape == (N, HEADS[-1] * NUM_HIDDEN)
    print("KERNEL_OK")
</pallas_src>

<mosaic_0001>
module attributes {stable_mosaic.version = 11 : i64} {
  func.func @_gat_project_kernel(%arg0: i32, %arg1: memref<16x8xf32, #tpu.memory_space<vmem>>, %arg2: memref<8x16xf32, #tpu.memory_space<vmem>>, %arg3: memref<16x2xf32, #tpu.memory_space<vmem>>, %arg4: memref<16x2xf32, #tpu.memory_space<vmem>>, %arg5: memref<16x16xbf16, #tpu.memory_space<vmem>>, %arg6: memref<2x16xf32, #tpu.memory_space<vmem>>, %arg7: memref<16x2xf32, #tpu.memory_space<vmem>>) attributes {dimension_semantics = [#tpu.dimension_semantics<parallel>], iteration_bounds = array<i64: 1>, scalar_prefetch = 0 : i64, scratch_operands = 0 : i64, tpu.core_type = #tpu.core_type<tc>, window_params = [{transform_indices = @transform_0, window_bounds = array<i64: 16, 8>}, {pipeline_mode = #tpu.pipeline_mode<synchronous>, transform_indices = @transform_1, window_bounds = array<i64: 8, 16>}, {pipeline_mode = #tpu.pipeline_mode<synchronous>, transform_indices = @transform_2, window_bounds = array<i64: 16, 2>}, {pipeline_mode = #tpu.pipeline_mode<synchronous>, transform_indices = @transform_3, window_bounds = array<i64: 16, 2>}, {transform_indices = @transform_4, window_bounds = array<i64: 16, 16>}, {transform_indices = @transform_5, window_bounds = array<i64: 2, 16>}, {transform_indices = @transform_6, window_bounds = array<i64: 16, 2>}]} {
    %c0 = arith.constant 0 : index
    %c0_0 = arith.constant 0 : index
    %0 = vector.load %arg1[%c0, %c0_0] : memref<16x8xf32, #tpu.memory_space<vmem>>, vector<16x8xf32>
    %1 = arith.truncf %0 : vector<16x8xf32> to vector<16x8xbf16>
    %c0_1 = arith.constant 0 : index
    %c0_2 = arith.constant 0 : index
    %2 = vector.load %arg2[%c0_1, %c0_2] : memref<8x16xf32, #tpu.memory_space<vmem>>, vector<8x16xf32>
    %3 = arith.truncf %2 : vector<8x16xf32> to vector<8x16xbf16>
    %cst = arith.constant dense<0.000000e+00> : vector<16x16xf32>
    %4 = tpu.matmul %1, %3, %cst {dimension_numbers = #tpu.dot_dimension_numbers<[1], [0], [0], [1], [0, 0, 1, 1], [], []>} : vector<16x8xbf16>, vector<8x16xbf16>, vector<16x16xf32> -> vector<16x16xf32>
    %5 = arith.truncf %4 : vector<16x16xf32> to vector<16x16xbf16>
    %c0_3 = arith.constant 0 : index
    %c0_4 = arith.constant 0 : index
    %6 = vector.load %arg5[%c0_3, %c0_4] : memref<16x16xbf16, #tpu.memory_space<vmem>>, vector<16x16xbf16>
    tpu.vector_store %arg5[%c0_3, %c0_4], %5 {strides = array<i32>} : memref<16x16xbf16, #tpu.memory_space<vmem>>, vector<16x16xbf16>,
    %c0_5 = arith.constant 0 : index
    %c0_6 = arith.constant 0 : index
    %7 = vector.load %arg3[%c0_5, %c0_6] : memref<16x2xf32, #tpu.memory_space<vmem>>, vector<16x2xf32>
    %8 = arith.truncf %7 : vector<16x2xf32> to vector<16x2xbf16>
    %cst_7 = arith.constant dense<0.000000e+00> : vector<2x16xf32>
    %9 = tpu.matmul %8, %5, %cst_7 {dimension_numbers = #tpu.dot_dimension_numbers<[0], [1], [1], [0], [0, 1, 1, 0], [], []>} : vector<16x2xbf16>, vector<16x16xbf16>, vector<2x16xf32> -> vector<2x16xf32>
    %c0_8 = arith.constant 0 : index
    %c0_9 = arith.constant 0 : index
    %10 = vector.load %arg6[%c0_8, %c0_9] : memref<2x16xf32, #tpu.memory_space<vmem>>, vector<2x16xf32>
    tpu.vector_store %arg6[%c0_8, %c0_9], %9 {strides = array<i32>} : memref<2x16xf32, #tpu.memory_space<vmem>>, vector<2x16xf32>,
    %c0_10 = arith.constant 0 : index
    %c0_11 = arith.constant 0 : index
    %11 = vector.load %arg4[%c0_10, %c0_11] : memref<16x2xf32, #tpu.memory_space<vmem>>, vector<16x2xf32>
    %12 = arith.truncf %11 : vector<16x2xf32> to vector<16x2xbf16>
    %cst_12 = arith.constant dense<0.000000e+00> : vector<16x2xf32>
    %13 = tpu.matmul %5, %12, %cst_12 {dimension_numbers = #tpu.dot_dimension_numbers<[1], [0], [0], [1], [0, 0, 1, 1], [], []>} : vector<16x16xbf16>, vector<16x2xbf16>, vector<16x2xf32> -> vector<16x2xf32>
    %c0_13 = arith.constant 0 : index
    %c0_14 = arith.constant 0 : index
    %14 = vector.load %arg7[%c0_13, %c0_14] : memref<16x2xf32, #tpu.memory_space<vmem>>, vector<16x2xf32>
    tpu.vector_store %arg7[%c0_13, %c0_14], %13 {strides = array<i32>} : memref<16x2xf32, #tpu.memory_space<vmem>>, vector<16x2xf32>,
    return
  }
  func.func @transform_0(%arg0: i32) -> (i32, i32) {
    %c0_i32 = arith.constant 0 : i32
    %c0_i32_0 = arith.constant 0 : i32
    return %arg0, %c0_i32 : i32, i32
  }
  func.func @transform_1(%arg0: i32) -> (i32, i32) {
    %c0_i32 = arith.constant 0 : i32
    %c0_i32_0 = arith.constant 0 : i32
    %c0_i32_1 = arith.constant 0 : i32
    return %c0_i32, %c0_i32_0 : i32, i32
  }
  func.func @transform_2(%arg0: i32) -> (i32, i32) {
    %c0_i32 = arith.constant 0 : i32
    %c0_i32_0 = arith.constant 0 : i32
    %c0_i32_1 = arith.constant 0 : i32
    return %c0_i32, %c0_i32_0 : i32, i32
  }
  func.func @transform_3(%arg0: i32) -> (i32, i32) {
    %c0_i32 = arith.constant 0 : i32
    %c0_i32_0 = arith.constant 0 : i32
    %c0_i32_1 = arith.constant 0 : i32
    return %c0_i32, %c0_i32_0 : i32, i32
  }
  func.func @transform_4(%arg0: i32) -> (i32, i32) {
    %c0_i32 = arith.constant 0 : i32
    %c0_i32_0 = arith.constant 0 : i32
    return %arg0, %c0_i32 : i32, i32
  }
  func.func @transform_5(%arg0: i32) -> (i32, i32) {
    %c0_i32 = arith.constant 0 : i32
    %c0_i32_0 = arith.constant 0 : i32
    return %c0_i32, %arg0 : i32, i32
  }
  func.func @transform_6(%arg0: i32) -> (i32, i32) {
    %c0_i32 = arith.constant 0 : i32
    %c0_i32_0 = arith.constant 0 : i32
    return %arg0, %c0_i32 : i32, i32
  }
}

</mosaic_0001>

<llo_original>
// kernel: tpu_custom_call.1
$region0: #{tpu_custom_call.1}
  #allocation0 [shape = 'u32[]', space=smem, size = 0x4, offset = 0x4, fixed_abs, tag = 'smem constant byte address 0x4 - core index']
  #allocation1 [shape = 'u32[72,128]{1,0:T(1,128)}', space=vmem, size = 0x9000, scoped, tag = 'internal scratch']
  %s0 = inlined_call_operand.vmem [shape: f32[16,8], index: 0, kind: input, shape index: {}]
  %s1 = inlined_call_operand.vmem [shape: f32[8,16], index: 1, kind: input, shape index: {}]
  %s2 = inlined_call_operand.vmem [shape: f32[16,2], index: 2, kind: input, shape index: {}]
  %s3 = inlined_call_operand.vmem [shape: f32[16,2], index: 3, kind: input, shape index: {}]
  %s4 = inlined_call_operand.hbm [shape: bf16[16,16], index: 4, kind: output, shape index: {0}]
  %s5 = inlined_call_operand.hbm [shape: f32[2,16], index: 5, kind: output, shape index: {1}]
  %s6 = inlined_call_operand.vmem [shape: f32[16,2], index: 6, kind: output, shape index: {2}]
  %7 = xla_tuple %s4, %s5, %s6
  %s8 = sld [smem:[#allocation0]]
  $region42: #{tpu_custom_call.1} parent=0
    _
  %s10 = ssub.s32 1, %s8
  %s11 = scalar_select 0, %s10, %s8
  $region1: #{tpu_custom_call.1} parent=0
    #allocation2 [shape = 'u8[4096]{0}', space=vmem, size = 0x1000, scoped, tag = 'output window, operand 0, single buffered']
    #allocation3 [shape = 's32[1]{0}', space=sflag, size = 0x4, scoped, tag = 'scoped memory for tpu_custom_call.1']
    #allocation4 [shape = 'u8[1024]{0}', space=vmem, size = 0x400, scoped, tag = 'output window, operand 1, single buffered']
    #allocation5 [shape = 's32[1]{0}', space=sflag, size = 0x4, scoped, tag = 'scoped memory for tpu_custom_call.1']
    %12 = vsyncpa [#allocation3], 0
    %13 = vsyncpa [#allocation5], 0
    // Predicated region
    $region2: #{tpu_custom_call.1} parent=1 // pred_check
      _
    $region3: #{tpu_custom_call.1} parent=1 // pred_check_branch
      %15 = sbr.rel (0) target = $region5
    $region4: #{tpu_custom_call.1} parent=1 // pred_region
      _
    $region5: #{tpu_custom_call.1} parent=1 // pred_fallthru
      _
    // Predicated region
    $region6: #{tpu_custom_call.1} parent=1 // pred_check
      _
    $region7: #{tpu_custom_call.1} parent=1 // pred_check_branch
      %17 = sbr.rel (0) target = $region9
    $region8: #{tpu_custom_call.1} parent=1 // pred_region
      _
    $region9: #{tpu_custom_call.1} parent=1 // pred_fallthru
      _
    // Predicated region
    $region10: #{tpu_custom_call.1} parent=1 // pred_check
      _
    $region11: #{tpu_custom_call.1} parent=1 // pred_check_branch
      %19 = sbr.rel (0) target = $region13
    $region12: #{tpu_custom_call.1} parent=1 // pred_region
      _
    $region13: #{tpu_custom_call.1} parent=1 // pred_fallthru
      _
    // Predicated region
    $region14: #{tpu_custom_call.1} parent=1 // pred_check
      _
    $region15: #{tpu_custom_call.1} parent=1 // pred_check_branch
      %21 = sbr.rel (0) target = $region17
    $region16: #{tpu_custom_call.1} parent=1 // pred_region
      _
    $region17: #{tpu_custom_call.1} parent=1 // pred_fallthru
      _
    %v23 = vld [vmem:[%s0] sm:$0xff]
    %v24 = vld [vmem:[%s0 + $0x8] sm:$0xff]
    %v25 = vpack.c.bf16 %v24, %v23
    %v26 = vld [vmem:[%s1] sm:$0xff]
    %v27 = vpack.c.bf16 %v26, %v26
    %vm28 = vcmask 64512
    %v30 = vsel %vm28, %v25, 0
    %vm32 = vcmask 1043456
    %v34 = vsel %vm32, %v27, 0
    %36 = vmatpush.bf16.msra.mxu0 0
    %37 = vmatpush.bf16.msra.mxu0 0
    %38 = vmatpush.bf16.msra.mxu0 0
    %39 = vmatpush.bf16.msra.mxu0 0
    %40 = vmatpush.bf16.msra.mxu0 0
    %41 = vmatpush.bf16.msra.mxu0 0
    %42 = vmatpush.bf16.msra.mxu0 0
    %43 = vmatpush.bf16.msra.mxu0 %v34
    %44 = vmatmul.bf16.gmra.mxu0 %v30
    %v45 = vpop.f32.mrf.mxu0
    %v46 = vadd.f32 0.0, %v45
    %v47 = vpop.f32.mrf.mxu0
    %v48 = vadd.f32 0.0, %v47
    %49 = vdwg.mxu0
    %v50 = vpack.c.bf16 %v46, %v46
    %v51 = vpack.c.bf16 %v48, %v48
    %vm52 = vcmask 125952
    %53 = vst.msk [vmem:[#allocation2] sm:$0xf] %vm52, %v50
    %54 = vst.msk [vmem:[#allocation2 + $0x4] sm:$0xf] %vm52, %v51
    %v55 = vld [vmem:[%s2] sm:$0xff]
    %v56 = vld [vmem:[%s2 + $0x8] sm:$0xff]
    %v57 = vpack.c.bf16 %v56, %v55
    %58 = vxpose.xlu0.c.b16.start [1/8] %v57, 128
    %59 = vxpose.xlu0.c.b16.cont [2/8] 0, 128
    %60 = vxpose.xlu0.c.b16.cont [3/8] 0, 128
    %61 = vxpose.xlu0.c.b16.cont [4/8] 0, 128
    %62 = vxpose.xlu0.c.b16.cont [5/8] 0, 128
    %63 = vxpose.xlu0.c.b16.cont [6/8] 0, 128
    %64 = vxpose.xlu0.c.b16.cont [7/8] 0, 128
    %65 = vxpose.xlu0.c.b16.end [8/8] 0, 128
    %v66 = vpop.trf.xlu0
    %v67 = vpop.trf.xlu0
    %v68 = vpop.trf.xlu0
    %v69 = vpop.trf.xlu0
    %v70 = vpop.trf.xlu0
    %v71 = vpop.trf.xlu0
    %v72 = vpop.trf.xlu0
    %v73 = vpop.trf.xlu0
    %v76 = vunpack.c.l.b16 %v50
    %v77 = vunpack.c.l.b16 %v51
    %v78 = vpack.c.b16 %v77, %v76
    %vm79 = vcmask 130048
    %v81 = vsel %vm79, %v66, 0
    %v84 = vsel %vm79, %v78, 0
    %86 = vmatpush.bf16.xpose.msra.mxu0 0
    %87 = vmatpush.bf16.xpose.msra.mxu0 0
    %88 = vmatpush.bf16.xpose.msra.mxu0 0
    %89 = vmatpush.bf16.xpose.msra.mxu0 0
    %90 = vmatpush.bf16.xpose.msra.mxu0 0
    %91 = vmatpush.bf16.xpose.msra.mxu0 0
    %92 = vmatpush.bf16.xpose.msra.mxu0 0
    %93 = vmatpush.bf16.xpose.msra.mxu0 %v84
    %94 = vmatmul.bf16.gmra.mxu0 %v81
    %v95 = vpop.f32.mrf.mxu0
    %v96 = vadd.f32 0.0, %v95
    %v97 = vpop.f32.mrf.mxu0
    %98 = vdwg.mxu0
    %vm99 = vcmask 123904
    %100 = vst.msk [vmem:[#allocation4] sm:$0x3] %vm99, %v96
    %v101 = vld [vmem:[%s3] sm:$0xff]
    %v102 = vld [vmem:[%s3 + $0x8] sm:$0xff]
    %v103 = vpack.c.bf16 %v102, %v101
    %104 = vmatpush.bf16.msra.mxu0 0
    %105 = vmatpush.bf16.msra.mxu0 0
    %106 = vmatpush.bf16.msra.mxu0 0
    %107 = vmatpush.bf16.msra.mxu0 0
    %108 = vmatpush.bf16.msra.mxu0 0
    %109 = vmatpush.bf16.msra.mxu0 0
    %110 = vmatpush.bf16.msra.mxu0 0
    %111 = vmatpush.bf16.msra.mxu0 %v103
    %112 = vmatmul.bf16.gmra.mxu0 %v84
    %v113 = vpop.f32.mrf.mxu0
    %v114 = vadd.f32 0.0, %v113
    %v115 = vpop.f32.mrf.mxu0
    %v116 = vadd.f32 0.0, %v115
    %117 = vdwg.mxu0
    %vm118 = vcmask 15360
    %119 = vst.msk [vmem:[%s6] sm:$0xff] %vm118, %v114
    %120 = vst.msk [vmem:[%s6 + $0x8] sm:$0xff] %vm118, %v116
    // Predicated region
    $region18: #{tpu_custom_call.1} parent=1 // pred_check
      _
    $region19: #{tpu_custom_call.1} parent=1 // pred_check_branch
      %122 = sbr.rel (0) target = $region21
    $region20: #{tpu_custom_call.1} parent=1 // pred_region
      %124 = vsyncadd [#allocation3], 0
      %s125 = sshll.u32 [#allocation2], 4
      %s126 = int_to_ptr.vmem [resolvable:$true] %s125
      %s127 = sshll.u32 %s4, 4
      %s128 = int_to_ptr.hbm [resolvable:$true] %s127
      %133 = dma.vmem_to_hbm [thread:$0]  %s126, 128, %s128, [#allocation3], 64, 64, 4
    $region21: #{tpu_custom_call.1} parent=1 // pred_fallthru
      _
    // Predicated region
    $region22: #{tpu_custom_call.1} parent=1 // pred_check
      _
    $region23: #{tpu_custom_call.1} parent=1 // pred_check_branch
      %135 = sbr.rel (0) target = $region25
    $region24: #{tpu_custom_call.1} parent=1 // pred_region
      %137 = vsyncadd [#allocation5], 0
      %s139 = sshll.u32 [#allocation4], 4
      %s140 = int_to_ptr.vmem [resolvable:$true] %s139
      %s141 = sshll.u32 %s5, 4
      %s142 = int_to_ptr.hbm [resolvable:$true] %s141
      %144 = dma.vmem_to_hbm [thread:$0]  %s140, 32, %s142, [#allocation5]
    $region25: #{tpu_custom_call.1} parent=1 // pred_fallthru
      _
    // Predicated region
    $region26: #{tpu_custom_call.1} parent=1 // pred_check
      _
    $region27: #{tpu_custom_call.1} parent=1 // pred_check_branch
      %146 = sbr.rel (0) target = $region29
    $region28: #{tpu_custom_call.1} parent=1 // pred_region
      _
    $region29: #{tpu_custom_call.1} parent=1 // pred_fallthru
      _
    // Predicated region
    $region30: #{tpu_custom_call.1} parent=1 // pred_check
      _
    $region31: #{tpu_custom_call.1} parent=1 // pred_check_branch
      %148 = sbr.rel (0) target = $region33
    $region32: #{tpu_custom_call.1} parent=1 // pred_region
      %150 = dma.done [#allocation3], 128
    $region33: #{tpu_custom_call.1} parent=1 // pred_fallthru
      _
    // Predicated region
    $region34: #{tpu_custom_call.1} parent=1 // pred_check
      _
    $region35: #{tpu_custom_call.1} parent=1 // pred_check_branch
      %152 = sbr.rel (0) target = $region37
    $region36: #{tpu_custom_call.1} parent=1 // pred_region
      %154 = dma.done [#allocation5], 32
    $region37: #{tpu_custom_call.1} parent=1 // pred_fallthru
      _
    // Predicated region
    $region38: #{tpu_custom_call.1} parent=1 // pred_check
      _
    $region39: #{tpu_custom_call.1} parent=1 // pred_check_branch
      %156 = sbr.rel (0) target = $region41
    $region40: #{tpu_custom_call.1} parent=1 // pred_region
      _
    $region41: #{tpu_custom_call.1} parent=1 // pred_fallthru
      _
    %157 = vsyncpa [#allocation3], 1
    %158 = vsyncpa [#allocation5], 1

</llo_original>
